<compile_context>
chip_gen: v6e
topology: v6e:2x2x1
jax: 0.10.0
libtpu: 0.0.40
codegen_flags: <defaults>
</compile_context>

<pallas_src>
import functools

import jax
import jax.numpy as jnp
from jax.experimental import pallas as pl
from jax.experimental.pallas import tpu as pltpu


def _round_up(n: int, m: int) -> int:
    return ((n + m - 1) // m) * m


def _pad_to(a, shape):
    pads = [(0, s - d) for d, s in zip(a.shape, shape)]
    return jnp.pad(a, pads)


def make_resnet1d_kernel(num_residual_blocks: int, has_remaining: bool):
    """Builds the fused kernel. Ref order:
       x, (w,b) input_hidden, [(w1,b1,w2,b2)] * num_residual_blocks,
       [(w,b)] if has_remaining, (w,b) hidden_output, out."""

    def kernel(*refs):
        x_ref = refs[0]
        o_ref = refs[-1]
        params = refs[1:-1]
        idx = [0]

        def next_wb():
            w, b = params[idx[0]], params[idx[0] + 1]
            idx[0] += 2
            return w, b

        def linear(h, w_ref, b_ref):
            # bf16 operands into the MXU, f32 accumulate; bias add stays f32.
            return (
                jnp.dot(
                    h.astype(w_ref.dtype),
                    w_ref[...],
                    preferred_element_type=jnp.float32,
                )
                + b_ref[...]
            )

        def act(h):  # ReLU (f32 on the VPU)
            return jnp.maximum(h, 0.0)

        # input_hidden_linear + activation
        w, b = next_wb()
        h = act(linear(x_ref[...], w, b))

        # residual blocks (input_dim == output_dim == hidden_dim -> identity shortcut)
        for _ in range(num_residual_blocks):
            w1, b1 = next_wb()
            w2, b2 = next_wb()
            y = act(linear(h, w1, b1))
            y = linear(y, w2, b2)
            h = act(y + h)

        # optional remaining hidden layer
        if has_remaining:
            w, b = next_wb()
            h = act(linear(h, w, b))

        # hidden_output_linear (no activation)
        w, b = next_wb()
        o_ref[...] = linear(h, w, b)

    return kernel


def prepare_resnet1d_params(params, weight_dtype=jnp.bfloat16):
    """One-time prep (NOT in the forward hot path): pad feature dims to 128
    lanes and cast weights to bf16. Biases stay f32 (added to f32 accumulator)."""
    padded = []
    for i in range(0, len(params), 2):
        w = params[i]
        b = params[i + 1]
        w_p = _pad_to(
            w.astype(jnp.float32),
            (_round_up(w.shape[0], 128), _round_up(w.shape[1], 128)),
        ).astype(weight_dtype)
        b_p = _pad_to(
            b.astype(jnp.float32).reshape(1, -1), (1, _round_up(b.shape[0], 128))
        )
        padded += [w_p, b_p]
    return padded


def resnet1d_pallas(
    x,
    padded_params,
    *,
    num_residual_blocks: int,
    has_remaining: bool,
    out_dim: int,
    tile_b: int = 128,
):
    """x: (B, input_dim) float32; padded_params: output of prepare_resnet1d_params."""
    B, in_dim = x.shape
    IN_P = padded_params[0].shape[0]
    OUT_P = padded_params[-2].shape[1]
    assert in_dim <= IN_P and out_dim <= OUT_P

    # Batch tiling: small batches run as a single tile, big batches pipeline in
    # tile_b-row chunks (and shard across v7x's two TensorCores).
    Bp = _round_up(max(B, 8), 8)
    if Bp <= tile_b:
        TILE_B = Bp
    else:
        Bp = _round_up(Bp, tile_b)
        TILE_B = tile_b
    grid = (Bp // TILE_B,)

    # Only the (cheap) activation pad remains per call; weights are pre-padded.
    x_p = _pad_to(x.astype(jnp.float32), (Bp, IN_P))

    kernel = make_resnet1d_kernel(num_residual_blocks, has_remaining)

    in_specs = [pl.BlockSpec((TILE_B, IN_P), lambda i: (i, 0))]
    for p in padded_params:
        # Constant block index -> weights/biases stay VMEM-resident, not
        # re-DMA'd per batch tile.
        in_specs.append(pl.BlockSpec(p.shape, lambda i: (0, 0)))
    out_specs = pl.BlockSpec((TILE_B, OUT_P), lambda i: (i, 0))

    weights = padded_params[0::2]
    flops = 2 * Bp * sum(int(w.shape[0]) * int(w.shape[1]) for w in weights)
    bytes_accessed = (
        x_p.size * x_p.dtype.itemsize
        + sum(int(p.size) * p.dtype.itemsize for p in padded_params)
        + Bp * OUT_P * 4
    )
    cost = pl.CostEstimate(
        flops=flops, transcendentals=0, bytes_accessed=bytes_accessed
    )

    out = pl.pallas_call(
        kernel,
        out_shape=jax.ShapeDtypeStruct((Bp, OUT_P), jnp.float32),
        grid=grid,
        in_specs=in_specs,
        out_specs=out_specs,
        compiler_params=pltpu.CompilerParams(
            dimension_semantics=("parallel",),
        ),
        cost_estimate=cost,
    )(x_p, *padded_params)

    return out[:B, :out_dim]


def resnet1d_reference(x, params, *, num_residual_blocks: int, has_remaining: bool):
    """Pure-JAX f32 reference mirroring the PyTorch forward."""
    idx = [0]

    def next_wb():
        w, b = params[idx[0]], params[idx[0] + 1]
        idx[0] += 2
        return w, b

    act = lambda h: jnp.maximum(h, 0.0)
    lin = lambda h, w, b: h @ w + b

    w, b = next_wb()
    h = act(lin(x, w, b))
    for _ in range(num_residual_blocks):
        w1, b1 = next_wb()
        w2, b2 = next_wb()
        y = act(lin(h, w1, b1))
        y = lin(y, w2, b2)
        h = act(y + h)
    if has_remaining:
        w, b = next_wb()
        h = act(lin(h, w, b))
    w, b = next_wb()
    return lin(h, w, b)


def init_resnet1d_params(key, input_dim, output_dim, hidden_dim, hidden_depth):
    """Deterministic synthetic init: N(0, 0.1) weights (stored (in, out)), zero biases."""
    num_residual_blocks = (hidden_depth - 1) // 2
    has_remaining = ((hidden_depth - 1) % 2) == 1

    shapes = [(input_dim, hidden_dim)]
    for _ in range(num_residual_blocks):
        shapes += [(hidden_dim, hidden_dim), (hidden_dim, hidden_dim)]
    if has_remaining:
        shapes += [(hidden_dim, hidden_dim)]
    shapes += [(hidden_dim, output_dim)]

    params = []
    for shape in shapes:
        key, sub = jax.random.split(key)
        w = 0.1 * jax.random.normal(sub, shape, dtype=jnp.float32)
        b = jnp.zeros((shape[1],), dtype=jnp.float32)
        params += [w, b]
    return params, num_residual_blocks, has_remaining


if __name__ == "__main__":
    # Small config: input_dim=12, hidden_dim=32, output_dim=6, hidden_depth=4
    #   -> 1 residual block + 1 remaining hidden layer.
    batch, input_dim, hidden_dim, output_dim, hidden_depth = 2, 12, 32, 6, 4

    key = jax.random.PRNGKey(0)
    key, xkey = jax.random.split(key)
    x = jax.random.normal(xkey, (batch, input_dim), dtype=jnp.float32)

    params, nrb, has_rem = init_resnet1d_params(
        key, input_dim, output_dim, hidden_dim, hidden_depth
    )

    # One-time prep outside the hot path: pad + bf16-cast the weights.
    padded_params = prepare_resnet1d_params(params)

    fwd = jax.jit(
        functools.partial(
            resnet1d_pallas,
            num_residual_blocks=nrb,
            has_remaining=has_rem,
            out_dim=output_dim,
        )
    )
    out = jax.block_until_ready(fwd(x, padded_params))

    ref = resnet1d_reference(
        x, params, num_residual_blocks=nrb, has_remaining=has_rem
    )
    assert out.shape == (batch, output_dim), out.shape
    # bf16 weights / f32 accumulation -> compare with bf16-appropriate tolerance.
    assert jnp.allclose(out, ref, atol=2e-2, rtol=2e-2), (out, ref)

    print("KERNEL_OK")
</pallas_src>

<mosaic_0001>
module attributes {stable_mosaic.version = 11 : i64} {
  func.func @kernel(%arg0: i32, %arg1: memref<8x128xf32, #tpu.memory_space<vmem>>, %arg2: memref<128x128xbf16, #tpu.memory_space<vmem>>, %arg3: memref<1x128xf32, #tpu.memory_space<vmem>>, %arg4: memref<128x128xbf16, #tpu.memory_space<vmem>>, %arg5: memref<1x128xf32, #tpu.memory_space<vmem>>, %arg6: memref<128x128xbf16, #tpu.memory_space<vmem>>, %arg7: memref<1x128xf32, #tpu.memory_space<vmem>>, %arg8: memref<128x128xbf16, #tpu.memory_space<vmem>>, %arg9: memref<1x128xf32, #tpu.memory_space<vmem>>, %arg10: memref<128x128xbf16, #tpu.memory_space<vmem>>, %arg11: memref<1x128xf32, #tpu.memory_space<vmem>>, %arg12: memref<8x128xf32, #tpu.memory_space<vmem>>) attributes {dimension_semantics = [#tpu.dimension_semantics<parallel>], iteration_bounds = array<i64: 1>, scalar_prefetch = 0 : i64, scratch_operands = 0 : i64, tpu.core_type = #tpu.core_type<tc>, window_params = [{transform_indices = @transform_0, window_bounds = array<i64: 8, 128>}, {pipeline_mode = #tpu.pipeline_mode<synchronous>, transform_indices = @transform_1, window_bounds = array<i64: 128, 128>}, {pipeline_mode = #tpu.pipeline_mode<synchronous>, transform_indices = @transform_2, window_bounds = array<i64: 1, 128>}, {pipeline_mode = #tpu.pipeline_mode<synchronous>, transform_indices = @transform_3, window_bounds = array<i64: 128, 128>}, {pipeline_mode = #tpu.pipeline_mode<synchronous>, transform_indices = @transform_4, window_bounds = array<i64: 1, 128>}, {pipeline_mode = #tpu.pipeline_mode<synchronous>, transform_indices = @transform_5, window_bounds = array<i64: 128, 128>}, {pipeline_mode = #tpu.pipeline_mode<synchronous>, transform_indices = @transform_6, window_bounds = array<i64: 1, 128>}, {pipeline_mode = #tpu.pipeline_mode<synchronous>, transform_indices = @transform_7, window_bounds = array<i64: 128, 128>}, {pipeline_mode = #tpu.pipeline_mode<synchronous>, transform_indices = @transform_8, window_bounds = array<i64: 1, 128>}, {pipeline_mode = #tpu.pipeline_mode<synchronous>, transform_indices = @transform_9, window_bounds = array<i64: 128, 128>}, {pipeline_mode = #tpu.pipeline_mode<synchronous>, transform_indices = @transform_10, window_bounds = array<i64: 1, 128>}, {transform_indices = @transform_11, window_bounds = array<i64: 8, 128>}]} {
    %c0 = arith.constant 0 : index
    %c0_0 = arith.constant 0 : index
    %0 = vector.load %arg1[%c0, %c0_0] : memref<8x128xf32, #tpu.memory_space<vmem>>, vector<8x128xf32>
    %1 = arith.truncf %0 : vector<8x128xf32> to vector<8x128xbf16>
    %c0_1 = arith.constant 0 : index
    %c0_2 = arith.constant 0 : index
    %2 = vector.load %arg2[%c0_1, %c0_2] : memref<128x128xbf16, #tpu.memory_space<vmem>>, vector<128x128xbf16>
    %cst = arith.constant dense<0.000000e+00> : vector<8x128xf32>
    %3 = tpu.matmul %1, %2, %cst {dimension_numbers = #tpu.dot_dimension_numbers<[1], [0], [0], [1], [0, 0, 1, 1], [], []>} : vector<8x128xbf16>, vector<128x128xbf16>, vector<8x128xf32> -> vector<8x128xf32>
    %c0_3 = arith.constant 0 : index
    %c0_4 = arith.constant 0 : index
    %4 = vector.load %arg3[%c0_3, %c0_4] : memref<1x128xf32, #tpu.memory_space<vmem>>, vector<1x128xf32>
    %5 = vector.broadcast %4 : vector<1x128xf32> to vector<8x128xf32>
    %6 = arith.addf %3, %5 : vector<8x128xf32>
    %cst_5 = arith.constant 0.000000e+00 : f32
    %7 = vector.broadcast %cst_5 : f32 to vector<8x128xf32>
    %8 = arith.maximumf %6, %7 : vector<8x128xf32>
    %9 = arith.truncf %8 : vector<8x128xf32> to vector<8x128xbf16>
    %c0_6 = arith.constant 0 : index
    %c0_7 = arith.constant 0 : index
    %10 = vector.load %arg4[%c0_6, %c0_7] : memref<128x128xbf16, #tpu.memory_space<vmem>>, vector<128x128xbf16>
    %cst_8 = arith.constant dense<0.000000e+00> : vector<8x128xf32>
    %11 = tpu.matmul %9, %10, %cst_8 {dimension_numbers = #tpu.dot_dimension_numbers<[1], [0], [0], [1], [0, 0, 1, 1], [], []>} : vector<8x128xbf16>, vector<128x128xbf16>, vector<8x128xf32> -> vector<8x128xf32>
    %c0_9 = arith.constant 0 : index
    %c0_10 = arith.constant 0 : index
    %12 = vector.load %arg5[%c0_9, %c0_10] : memref<1x128xf32, #tpu.memory_space<vmem>>, vector<1x128xf32>
    %13 = vector.broadcast %12 : vector<1x128xf32> to vector<8x128xf32>
    %14 = arith.addf %11, %13 : vector<8x128xf32>
    %cst_11 = arith.constant 0.000000e+00 : f32
    %15 = vector.broadcast %cst_11 : f32 to vector<8x128xf32>
    %16 = arith.maximumf %14, %15 : vector<8x128xf32>
    %17 = arith.truncf %16 : vector<8x128xf32> to vector<8x128xbf16>
    %c0_12 = arith.constant 0 : index
    %c0_13 = arith.constant 0 : index
    %18 = vector.load %arg6[%c0_12, %c0_13] : memref<128x128xbf16, #tpu.memory_space<vmem>>, vector<128x128xbf16>
    %cst_14 = arith.constant dense<0.000000e+00> : vector<8x128xf32>
    %19 = tpu.matmul %17, %18, %cst_14 {dimension_numbers = #tpu.dot_dimension_numbers<[1], [0], [0], [1], [0, 0, 1, 1], [], []>} : vector<8x128xbf16>, vector<128x128xbf16>, vector<8x128xf32> -> vector<8x128xf32>
    %c0_15 = arith.constant 0 : index
    %c0_16 = arith.constant 0 : index
    %20 = vector.load %arg7[%c0_15, %c0_16] : memref<1x128xf32, #tpu.memory_space<vmem>>, vector<1x128xf32>
    %21 = vector.broadcast %20 : vector<1x128xf32> to vector<8x128xf32>
    %22 = arith.addf %19, %21 : vector<8x128xf32>
    %23 = arith.addf %22, %8 : vector<8x128xf32>
    %cst_17 = arith.constant 0.000000e+00 : f32
    %24 = vector.broadcast %cst_17 : f32 to vector<8x128xf32>
    %25 = arith.maximumf %23, %24 : vector<8x128xf32>
    %26 = arith.truncf %25 : vector<8x128xf32> to vector<8x128xbf16>
    %c0_18 = arith.constant 0 : index
    %c0_19 = arith.constant 0 : index
    %27 = vector.load %arg8[%c0_18, %c0_19] : memref<128x128xbf16, #tpu.memory_space<vmem>>, vector<128x128xbf16>
    %cst_20 = arith.constant dense<0.000000e+00> : vector<8x128xf32>
    %28 = tpu.matmul %26, %27, %cst_20 {dimension_numbers = #tpu.dot_dimension_numbers<[1], [0], [0], [1], [0, 0, 1, 1], [], []>} : vector<8x128xbf16>, vector<128x128xbf16>, vector<8x128xf32> -> vector<8x128xf32>
    %c0_21 = arith.constant 0 : index
    %c0_22 = arith.constant 0 : index
    %29 = vector.load %arg9[%c0_21, %c0_22] : memref<1x128xf32, #tpu.memory_space<vmem>>, vector<1x128xf32>
    %30 = vector.broadcast %29 : vector<1x128xf32> to vector<8x128xf32>
    %31 = arith.addf %28, %30 : vector<8x128xf32>
    %cst_23 = arith.constant 0.000000e+00 : f32
    %32 = vector.broadcast %cst_23 : f32 to vector<8x128xf32>
    %33 = arith.maximumf %31, %32 : vector<8x128xf32>
    %34 = arith.truncf %33 : vector<8x128xf32> to vector<8x128xbf16>
    %c0_24 = arith.constant 0 : index
    %c0_25 = arith.constant 0 : index
    %35 = vector.load %arg10[%c0_24, %c0_25] : memref<128x128xbf16, #tpu.memory_space<vmem>>, vector<128x128xbf16>
    %cst_26 = arith.constant dense<0.000000e+00> : vector<8x128xf32>
    %36 = tpu.matmul %34, %35, %cst_26 {dimension_numbers = #tpu.dot_dimension_numbers<[1], [0], [0], [1], [0, 0, 1, 1], [], []>} : vector<8x128xbf16>, vector<128x128xbf16>, vector<8x128xf32> -> vector<8x128xf32>
    %c0_27 = arith.constant 0 : index
    %c0_28 = arith.constant 0 : index
    %37 = vector.load %arg11[%c0_27, %c0_28] : memref<1x128xf32, #tpu.memory_space<vmem>>, vector<1x128xf32>
    %38 = vector.broadcast %37 : vector<1x128xf32> to vector<8x128xf32>
    %39 = arith.addf %36, %38 : vector<8x128xf32>
    %c0_29 = arith.constant 0 : index
    %c0_30 = arith.constant 0 : index
    %40 = vector.load %arg12[%c0_29, %c0_30] : memref<8x128xf32, #tpu.memory_space<vmem>>, vector<8x128xf32>
    tpu.vector_store %arg12[%c0_29, %c0_30], %39 {strides = array<i32>} : memref<8x128xf32, #tpu.memory_space<vmem>>, vector<8x128xf32>,
    return
  }
  func.func @transform_0(%arg0: i32) -> (i32, i32) {
    %c0_i32 = arith.constant 0 : i32
    %c0_i32_0 = arith.constant 0 : i32
    return %arg0, %c0_i32 : i32, i32
  }
  func.func @transform_1(%arg0: i32) -> (i32, i32) {
    %c0_i32 = arith.constant 0 : i32
    %c0_i32_0 = arith.constant 0 : i32
    %c0_i32_1 = arith.constant 0 : i32
    return %c0_i32, %c0_i32_0 : i32, i32
  }
  func.func @transform_2(%arg0: i32) -> (i32, i32) {
    %c0_i32 = arith.constant 0 : i32
    %c0_i32_0 = arith.constant 0 : i32
    %c0_i32_1 = arith.constant 0 : i32
    return %c0_i32, %c0_i32_0 : i32, i32
  }
  func.func @transform_3(%arg0: i32) -> (i32, i32) {
    %c0_i32 = arith.constant 0 : i32
    %c0_i32_0 = arith.constant 0 : i32
    %c0_i32_1 = arith.constant 0 : i32
    return %c0_i32, %c0_i32_0 : i32, i32
  }
  func.func @transform_4(%arg0: i32) -> (i32, i32) {
    %c0_i32 = arith.constant 0 : i32
    %c0_i32_0 = arith.constant 0 : i32
    %c0_i32_1 = arith.constant 0 : i32
    return %c0_i32, %c0_i32_0 : i32, i32
  }
  func.func @transform_5(%arg0: i32) -> (i32, i32) {
    %c0_i32 = arith.constant 0 : i32
    %c0_i32_0 = arith.constant 0 : i32
    %c0_i32_1 = arith.constant 0 : i32
    return %c0_i32, %c0_i32_0 : i32, i32
  }
  func.func @transform_6(%arg0: i32) -> (i32, i32) {
    %c0_i32 = arith.constant 0 : i32
    %c0_i32_0 = arith.constant 0 : i32
    %c0_i32_1 = arith.constant 0 : i32
    return %c0_i32, %c0_i32_0 : i32, i32
  }
  func.func @transform_7(%arg0: i32) -> (i32, i32) {
    %c0_i32 = arith.constant 0 : i32
    %c0_i32_0 = arith.constant 0 : i32
    %c0_i32_1 = arith.constant 0 : i32
    return %c0_i32, %c0_i32_0 : i32, i32
  }
  func.func @transform_8(%arg0: i32) -> (i32, i32) {
    %c0_i32 = arith.constant 0 : i32
    %c0_i32_0 = arith.constant 0 : i32
    %c0_i32_1 = arith.constant 0 : i32
    return %c0_i32, %c0_i32_0 : i32, i32
  }
  func.func @transform_9(%arg0: i32) -> (i32, i32) {
    %c0_i32 = arith.constant 0 : i32
    %c0_i32_0 = arith.constant 0 : i32
    %c0_i32_1 = arith.constant 0 : i32
    return %c0_i32, %c0_i32_0 : i32, i32
  }
  func.func @transform_10(%arg0: i32) -> (i32, i32) {
    %c0_i32 = arith.constant 0 : i32
    %c0_i32_0 = arith.constant 0 : i32
    %c0_i32_1 = arith.constant 0 : i32
    return %c0_i32, %c0_i32_0 : i32, i32
  }
  func.func @transform_11(%arg0: i32) -> (i32, i32) {
    %c0_i32 = arith.constant 0 : i32
    %c0_i32_0 = arith.constant 0 : i32
    return %arg0, %c0_i32 : i32, i32
  }
}

</mosaic_0001>

<llo_original>
// kernel: resnet1d_pallas.1
$region0: #{resnet1d_pallas.1}
  #allocation0 [shape = 'u32[]', space=smem, size = 0x4, offset = 0x4, fixed_abs, tag = 'smem constant byte address 0x4 - core index']
  #allocation1 [shape = 'u32[144,128]{1,0:T(1,128)}', space=vmem, size = 0x12000, scoped, tag = 'internal scratch']
  %s0 = inlined_call_operand.vmem [shape: f32[8,128], index: 0, kind: input, shape index: {}]
  %s1 = inlined_call_operand.hbm [shape: bf16[128,128], index: 1, kind: input, shape index: {}]
  %s2 = inlined_call_operand.vmem [shape: f32[1,128], index: 2, kind: input, shape index: {}]
  %s3 = inlined_call_operand.hbm [shape: bf16[128,128], index: 3, kind: input, shape index: {}]
  %s4 = inlined_call_operand.vmem [shape: f32[1,128], index: 4, kind: input, shape index: {}]
  %s5 = inlined_call_operand.hbm [shape: bf16[128,128], index: 5, kind: input, shape index: {}]
  %s6 = inlined_call_operand.vmem [shape: f32[1,128], index: 6, kind: input, shape index: {}]
  %s7 = inlined_call_operand.hbm [shape: bf16[128,128], index: 7, kind: input, shape index: {}]
  %s8 = inlined_call_operand.vmem [shape: f32[1,128], index: 8, kind: input, shape index: {}]
  %s9 = inlined_call_operand.hbm [shape: bf16[128,128], index: 9, kind: input, shape index: {}]
  %s10 = inlined_call_operand.vmem [shape: f32[1,128], index: 10, kind: input, shape index: {}]
  %s11 = inlined_call_operand.vmem [shape: f32[8,128], index: 11, kind: output, shape index: {}]
  %s12 = sld [smem:[#allocation0]]
  $region74: #{resnet1d_pallas.1} parent=0
    _
  %s14 = ssub.s32 1, %s12
  %s15 = scalar_select 0, %s14, %s12
  $region1: #{resnet1d_pallas.1} parent=0
    #allocation2 [shape = 'u8[32768]{0}', space=vmem, size = 0x8000, scoped, tag = 'input window, operand 1, single buffered']
    #allocation3 [shape = 's32[1]{0}', space=sflag, size = 0x4, scoped, tag = 'scoped memory for resnet1d_pallas.1']
    #allocation4 [shape = 'u8[32768]{0}', space=vmem, size = 0x8000, scoped, tag = 'input window, operand 3, single buffered']
    #allocation5 [shape = 's32[1]{0}', space=sflag, size = 0x4, scoped, tag = 'scoped memory for resnet1d_pallas.1']
    #allocation6 [shape = 'u8[32768]{0}', space=vmem, size = 0x8000, scoped, tag = 'input window, operand 5, single buffered']
    #allocation7 [shape = 'u8[32768]{0}', space=vmem, size = 0x8000, scoped, tag = 'input window, operand 7, single buffered']
    #allocation8 [shape = 's32[1]{0}', space=sflag, size = 0x4, scoped, tag = 'scoped memory for resnet1d_pallas.1']
    #allocation9 [shape = 'u8[32768]{0}', space=vmem, size = 0x8000, scoped, tag = 'input window, operand 9, single buffered']
    %16 = vsyncpa [#allocation3], 0
    %17 = vsyncpa [#allocation5], 0
    %18 = vsyncpa [#allocation8], 0
    // Predicated region
    $region2: #{resnet1d_pallas.1} parent=1 // pred_check
      _
    $region3: #{resnet1d_pallas.1} parent=1 // pred_check_branch
      %20 = sbr.rel (0) target = $region5
    $region4: #{resnet1d_pallas.1} parent=1 // pred_region
      _
    $region5: #{resnet1d_pallas.1} parent=1 // pred_fallthru
      _
    // Predicated region
    $region6: #{resnet1d_pallas.1} parent=1 // pred_check
      _
    $region7: #{resnet1d_pallas.1} parent=1 // pred_check_branch
      %22 = sbr.rel (0) target = $region9
    $region8: #{resnet1d_pallas.1} parent=1 // pred_region
      %s24 = ssub.s32 1024, 1024
      %25 = vsyncadd [#allocation3], %s24
      %s26 = sshll.u32 [#allocation2], 4
      %s27 = int_to_ptr.vmem [resolvable:$true] %s26
      %32 = dma.hbm_to_vmem [thread:$0]  %s1, 1024, %s27, [#allocation3], 64, 64, 4
    $region9: #{resnet1d_pallas.1} parent=1 // pred_fallthru
      _
    // Predicated region
    $region10: #{resnet1d_pallas.1} parent=1 // pred_check
      _
    $region11: #{resnet1d_pallas.1} parent=1 // pred_check_branch
      %34 = sbr.rel (0) target = $region13
    $region12: #{resnet1d_pallas.1} parent=1 // pred_region
      _
    $region13: #{resnet1d_pallas.1} parent=1 // pred_fallthru
      _
    // Predicated region
    $region14: #{resnet1d_pallas.1} parent=1 // pred_check
      _
    $region15: #{resnet1d_pallas.1} parent=1 // pred_check_branch
      %36 = sbr.rel (0) target = $region17
    $region16: #{resnet1d_pallas.1} parent=1 // pred_region
      %s38 = ssub.s32 1024, 1024
      %39 = vsyncadd [#allocation5], %s38
      %s40 = sshll.u32 [#allocation4], 4
      %s41 = int_to_ptr.vmem [resolvable:$true] %s40
      %46 = dma.hbm_to_vmem [thread:$0]  %s3, 1024, %s41, [#allocation5], 64, 64, 4
    $region17: #{resnet1d_pallas.1} parent=1 // pred_fallthru
      _
    // Predicated region
    $region18: #{resnet1d_pallas.1} parent=1 // pred_check
      _
    $region19: #{resnet1d_pallas.1} parent=1 // pred_check_branch
      %48 = sbr.rel (0) target = $region21
    $region20: #{resnet1d_pallas.1} parent=1 // pred_region
      _
    $region21: #{resnet1d_pallas.1} parent=1 // pred_fallthru
      _
    // Predicated region
    $region22: #{resnet1d_pallas.1} parent=1 // pred_check
      _
    $region23: #{resnet1d_pallas.1} parent=1 // pred_check_branch
      %50 = sbr.rel (0) target = $region25
    $region24: #{resnet1d_pallas.1} parent=1 // pred_region
      %s52 = ssub.s32 1024, 1024
      %53 = vsyncadd [#allocation5], %s52
      %s54 = sshll.u32 [#allocation6], 4
      %s55 = int_to_ptr.vmem [resolvable:$true] %s54
      %60 = dma.hbm_to_vmem [thread:$0]  %s5, 1024, %s55, [#allocation5], 64, 64, 4
    $region25: #{resnet1d_pallas.1} parent=1 // pred_fallthru
      _
    // Predicated region
    $region26: #{resnet1d_pallas.1} parent=1 // pred_check
      _
    $region27: #{resnet1d_pallas.1} parent=1 // pred_check_branch
      %62 = sbr.rel (0) target = $region29
    $region28: #{resnet1d_pallas.1} parent=1 // pred_region
      _
    $region29: #{resnet1d_pallas.1} parent=1 // pred_fallthru
      _
    // Predicated region
    $region30: #{resnet1d_pallas.1} parent=1 // pred_check
      _
    $region31: #{resnet1d_pallas.1} parent=1 // pred_check_branch
      %64 = sbr.rel (0) target = $region33
    $region32: #{resnet1d_pallas.1} parent=1 // pred_region
      %s66 = ssub.s32 1024, 1024
      %67 = vsyncadd [#allocation8], %s66
      %s68 = sshll.u32 [#allocation7], 4
      %s69 = int_to_ptr.vmem [resolvable:$true] %s68
      %74 = dma.hbm_to_vmem [thread:$0]  %s7, 1024, %s69, [#allocation8], 64, 64, 4
    $region33: #{resnet1d_pallas.1} parent=1 // pred_fallthru
      _
    // Predicated region
    $region34: #{resnet1d_pallas.1} parent=1 // pred_check
      _
    $region35: #{resnet1d_pallas.1} parent=1 // pred_check_branch
      %76 = sbr.rel (0) target = $region37
    $region36: #{resnet1d_pallas.1} parent=1 // pred_region
      _
    $region37: #{resnet1d_pallas.1} parent=1 // pred_fallthru
      _
    // Predicated region
    $region38: #{resnet1d_pallas.1} parent=1 // pred_check
      _
    $region39: #{resnet1d_pallas.1} parent=1 // pred_check_branch
      %78 = sbr.rel (0) target = $region41
    $region40: #{resnet1d_pallas.1} parent=1 // pred_region
      %s80 = ssub.s32 1024, 1024
      %81 = vsyncadd [#allocation8], %s80
      %s82 = sshll.u32 [#allocation9], 4
      %s83 = int_to_ptr.vmem [resolvable:$true] %s82
      %88 = dma.hbm_to_vmem [thread:$0]  %s9, 1024, %s83, [#allocation8], 64, 64, 4
    $region41: #{resnet1d_pallas.1} parent=1 // pred_fallthru
      _
    // Predicated region
    $region42: #{resnet1d_pallas.1} parent=1 // pred_check
      _
    $region43: #{resnet1d_pallas.1} parent=1 // pred_check_branch
      %90 = sbr.rel (0) target = $region45
    $region44: #{resnet1d_pallas.1} parent=1 // pred_region
      _
    $region45: #{resnet1d_pallas.1} parent=1 // pred_fallthru
      _
    // Predicated region
    $region46: #{resnet1d_pallas.1} parent=1 // pred_check
      _
    $region47: #{resnet1d_pallas.1} parent=1 // pred_check_branch
      %92 = sbr.rel (0) target = $region49
    $region48: #{resnet1d_pallas.1} parent=1 // pred_region
      %93 = dma.done [#allocation3], 1024
    $region49: #{resnet1d_pallas.1} parent=1 // pred_fallthru
      _
    // Predicated region
    $region50: #{resnet1d_pallas.1} parent=1 // pred_check
      _
    $region51: #{resnet1d_pallas.1} parent=1 // pred_check_branch
      %95 = sbr.rel (0) target = $region53
    $region52: #{resnet1d_pallas.1} parent=1 // pred_region
      %96 = dma.done [#allocation5], 1024
    $region53: #{resnet1d_pallas.1} parent=1 // pred_fallthru
      _
    // Predicated region
    $region54: #{resnet1d_pallas.1} parent=1 // pred_check
      _
    $region55: #{resnet1d_pallas.1} parent=1 // pred_check_branch
      %98 = sbr.rel (0) target = $region57
    $region56: #{resnet1d_pallas.1} parent=1 // pred_region
      %99 = dma.done [#allocation5], 1024
    $region57: #{resnet1d_pallas.1} parent=1 // pred_fallthru
      _
    // Predicated region
    $region58: #{resnet1d_pallas.1} parent=1 // pred_check
      _
    $region59: #{resnet1d_pallas.1} parent=1 // pred_check_branch
      %101 = sbr.rel (0) target = $region61
    $region60: #{resnet1d_pallas.1} parent=1 // pred_region
      %102 = dma.done [#allocation8], 1024
    $region61: #{resnet1d_pallas.1} parent=1 // pred_fallthru
      _
    // Predicated region
    $region62: #{resnet1d_pallas.1} parent=1 // pred_check
      _
    $region63: #{resnet1d_pallas.1} parent=1 // pred_check_branch
      %104 = sbr.rel (0) target = $region65
    $region64: #{resnet1d_pallas.1} parent=1 // pred_region
      %105 = dma.done [#allocation8], 1024
    $region65: #{resnet1d_pallas.1} parent=1 // pred_fallthru
      _
    %v107 = vld [vmem:[%s0] sm:$0xff]
    %v108 = vpack.c.bf16 %v107, %v107
    %v109 = vld [vmem:[#allocation2] sm:$0xf]
    %v110 = vld [vmem:[#allocation2 + $0x4] sm:$0xf]
    %v111 = vld [vmem:[#allocation2 + $0x8] sm:$0xf]
    %v112 = vld [vmem:[#allocation2 + $0xc] sm:$0xf]
    %v113 = vld [vmem:[#allocation2 + $0x10] sm:$0xf]
    %v114 = vld [vmem:[#allocation2 + $0x14] sm:$0xf]
    %v115 = vld [vmem:[#allocation2 + $0x18] sm:$0xf]
    %v116 = vld [vmem:[#allocation2 + $0x1c] sm:$0xf]
    %v117 = vld [vmem:[#allocation2 + $0x20] sm:$0xf]
    %v118 = vld [vmem:[#allocation2 + $0x24] sm:$0xf]
    %v119 = vld [vmem:[#allocation2 + $0x28] sm:$0xf]
    %v120 = vld [vmem:[#allocation2 + $0x2c] sm:$0xf]
    %v121 = vld [vmem:[#allocation2 + $0x30] sm:$0xf]
    %v122 = vld [vmem:[#allocation2 + $0x34] sm:$0xf]
    %v123 = vld [vmem:[#allocation2 + $0x38] sm:$0xf]
    %v124 = vld [vmem:[#allocation2 + $0x3c] sm:$0xf]
    %v125 = vld [vmem:[%s2] sm:$0x1]
    %v127 = vlaneseq
    %v128 = vshrl.u32 %v127, 7
    %v129 = vsub.s32 0, %v128
    %v130 = vrot.slane %v125, %v129
    %v148 = vunpack.c.l.b16 %v109
    %v149 = vunpack.c.l.b16 %v110
    %v150 = vunpack.c.l.b16 %v111
    %v151 = vunpack.c.l.b16 %v112
    %v152 = vunpack.c.l.b16 %v113
    %v153 = vunpack.c.l.b16 %v114
    %v154 = vunpack.c.l.b16 %v115
    %v155 = vunpack.c.l.b16 %v116
    %v156 = vunpack.c.l.b16 %v117
    %v157 = vunpack.c.l.b16 %v118
    %v158 = vunpack.c.l.b16 %v119
    %v159 = vunpack.c.l.b16 %v120
    %v160 = vunpack.c.l.b16 %v121
    %v161 = vunpack.c.l.b16 %v122
    %v162 = vunpack.c.l.b16 %v123
    %v163 = vunpack.c.l.b16 %v124
    %v164 = vpack.c.b16 %v149, %v148
    %v165 = vpack.c.b16 %v151, %v150
    %v166 = vpack.c.b16 %v153, %v152
    %v167 = vpack.c.b16 %v155, %v154
    %v168 = vpack.c.b16 %v157, %v156
    %v169 = vpack.c.b16 %v159, %v158
    %v170 = vpack.c.b16 %v161, %v160
    %v171 = vpack.c.b16 %v163, %v162
    %180 = vmatprep.subr.bf16.mxu0 0
    %181 = vmatpush1.bf16.msra.mxu0 %v171
    %182 = vmatprep.subr.bf16.mxu0 0
    %183 = vmatpush1.bf16.msra.mxu0 %v170
    %184 = vmatprep.subr.bf16.mxu0 0
    %185 = vmatpush1.bf16.msra.mxu0 %v169
    %186 = vmatprep.subr.bf16.mxu0 0
    %187 = vmatpush1.bf16.msra.mxu0 %v168
    %188 = vmatprep.subr.bf16.mxu0 0
    %189 = vmatpush1.bf16.msra.mxu0 %v167
    %190 = vmatprep.subr.bf16.mxu0 0
    %191 = vmatpush1.bf16.msra.mxu0 %v166
    %192 = vmatprep.subr.bf16.mxu0 0
    %193 = vmatpush1.bf16.msra.mxu0 %v165
    %194 = vmatprep.subr.bf16.mxu0 0
    %195 = vmatpush1.bf16.msra.mxu0 %v164
    %196 = vmatprep.subr.bf16.mxu0 0
    %197 = vmatpush2.bf16.msra.mxu0 0
    %198 = vmatprep.subr.bf16.mxu0 0
    %199 = vmatpush2.bf16.msra.mxu0 0
    %200 = vmatprep.subr.bf16.mxu0 0
    %201 = vmatpush2.bf16.msra.mxu0 0
    %202 = vmatprep.subr.bf16.mxu0 0
    %203 = vmatpush2.bf16.msra.mxu0 0
    %204 = vmatprep.subr.bf16.mxu0 0
    %205 = vmatpush2.bf16.msra.mxu0 0
    %206 = vmatprep.subr.bf16.mxu0 0
    %207 = vmatpush2.bf16.msra.mxu0 0
    %208 = vmatprep.subr.bf16.mxu0 0
    %209 = vmatpush2.bf16.msra.mxu0 0
    %210 = vmatprep.subr.bf16.mxu0 0
    %211 = vmatpush2.bf16.msra.mxu0 0
    %212 = vmatprep.mubr.bf16.mxu0 0
    %213 = vmatmul.mubr.bf16.gmra.mxu0 %v108
    %v214 = vpop.f32.mrf.mxu0
    %v215 = vadd.f32 %v130, %v214
    %v216 = vpop.f32.mrf.mxu0
    %v217 = vpop.f32.mrf.mxu0
    %v218 = vpop.f32.mrf.mxu0
    %219 = vdwg.mxu0
    %v220 = vmax.f32 %v215, 0.0
    %v221 = vpack.c.bf16 %v220, %v220
    %v222 = vld [vmem:[#allocation4] sm:$0xf]
    %v223 = vld [vmem:[#allocation4 + $0x4] sm:$0xf]
    %v224 = vld [vmem:[#allocation4 + $0x8] sm:$0xf]
    %v225 = vld [vmem:[#allocation4 + $0xc] sm:$0xf]
    %v226 = vld [vmem:[#allocation4 + $0x10] sm:$0xf]
    %v227 = vld [vmem:[#allocation4 + $0x14] sm:$0xf]
    %v228 = vld [vmem:[#allocation4 + $0x18] sm:$0xf]
    %v229 = vld [vmem:[#allocation4 + $0x1c] sm:$0xf]
    %v230 = vld [vmem:[#allocation4 + $0x20] sm:$0xf]
    %v231 = vld [vmem:[#allocation4 + $0x24] sm:$0xf]
    %v232 = vld [vmem:[#allocation4 + $0x28] sm:$0xf]
    %v233 = vld [vmem:[#allocation4 + $0x2c] sm:$0xf]
    %v234 = vld [vmem:[#allocation4 + $0x30] sm:$0xf]
    %v235 = vld [vmem:[#allocation4 + $0x34] sm:$0xf]
    %v236 = vld [vmem:[#allocation4 + $0x38] sm:$0xf]
    %v237 = vld [vmem:[#allocation4 + $0x3c] sm:$0xf]
    %v238 = vld [vmem:[%s4] sm:$0x1]
    %v240 = vlaneseq
    %v241 = vshrl.u32 %v240, 7
    %v242 = vsub.s32 0, %v241
    %v243 = vrot.slane %v238, %v242
    %v261 = vunpack.c.l.b16 %v222
    %v262 = vunpack.c.l.b16 %v223
    %v263 = vunpack.c.l.b16 %v224
    %v264 = vunpack.c.l.b16 %v225
    %v265 = vunpack.c.l.b16 %v226
    %v266 = vunpack.c.l.b16 %v227
    %v267 = vunpack.c.l.b16 %v228
    %v268 = vunpack.c.l.b16 %v229
    %v269 = vunpack.c.l.b16 %v230
    %v270 = vunpack.c.l.b16 %v231
    %v271 = vunpack.c.l.b16 %v232
    %v272 = vunpack.c.l.b16 %v233
    %v273 = vunpack.c.l.b16 %v234
    %v274 = vunpack.c.l.b16 %v235
    %v275 = vunpack.c.l.b16 %v236
    %v276 = vunpack.c.l.b16 %v237
    %v277 = vpack.c.b16 %v262, %v261
    %v278 = vpack.c.b16 %v264, %v263
    %v279 = vpack.c.b16 %v266, %v265
    %v280 = vpack.c.b16 %v268, %v267
    %v281 = vpack.c.b16 %v270, %v269
    %v282 = vpack.c.b16 %v272, %v271
    %v283 = vpack.c.b16 %v274, %v273
    %v284 = vpack.c.b16 %v276, %v275
    %293 = vmatprep.subr.bf16.mxu0 0
    %294 = vmatpush1.bf16.msra.mxu0 %v284
    %295 = vmatprep.subr.bf16.mxu0 0
    %296 = vmatpush1.bf16.msra.mxu0 %v283
    %297 = vmatprep.subr.bf16.mxu0 0
    %298 = vmatpush1.bf16.msra.mxu0 %v282
    %299 = vmatprep.subr.bf16.mxu0 0
    %300 = vmatpush1.bf16.msra.mxu0 %v281
    %301 = vmatprep.subr.bf16.mxu0 0
    %302 = vmatpush1.bf16.msra.mxu0 %v280
    %303 = vmatprep.subr.bf16.mxu0 0
    %304 = vmatpush1.bf16.msra.mxu0 %v279
    %305 = vmatprep.subr.bf16.mxu0 0
    %306 = vmatpush1.bf16.msra.mxu0 %v278
    %307 = vmatprep.subr.bf16.mxu0 0
    %308 = vmatpush1.bf16.msra.mxu0 %v277
    %309 = vmatprep.subr.bf16.mxu0 0
    %310 = vmatpush2.bf16.msra.mxu0 0
    %311 = vmatprep.subr.bf16.mxu0 0
    %312 = vmatpush2.bf16.msra.mxu0 0
    %313 = vmatprep.subr.bf16.mxu0 0
    %314 = vmatpush2.bf16.msra.mxu0 0
    %315 = vmatprep.subr.bf16.mxu0 0
    %316 = vmatpush2.bf16.msra.mxu0 0
    %317 = vmatprep.subr.bf16.mxu0 0
    %318 = vmatpush2.bf16.msra.mxu0 0
    %319 = vmatprep.subr.bf16.mxu0 0
    %320 = vmatpush2.bf16.msra.mxu0 0
    %321 = vmatprep.subr.bf16.mxu0 0
    %322 = vmatpush2.bf16.msra.mxu0 0
    %323 = vmatprep.subr.bf16.mxu0 0
    %324 = vmatpush2.bf16.msra.mxu0 0
    %325 = vmatprep.mubr.bf16.mxu0 0
    %326 = vmatmul.mubr.bf16.gmra.mxu0 %v221
    %v327 = vpop.f32.mrf.mxu0
    %v328 = vadd.f32 %v243, %v327
    %v329 = vpop.f32.mrf.mxu0
    %v330 = vpop.f32.mrf.mxu0
    %v331 = vpop.f32.mrf.mxu0
    %332 = vdwg.mxu0
    %v333 = vmax.f32 %v328, 0.0
    %v334 = vpack.c.bf16 %v333, %v333
    %v335 = vld [vmem:[#allocation6] sm:$0xf]
    %v336 = vld [vmem:[#allocation6 + $0x4] sm:$0xf]
    %v337 = vld [vmem:[#allocation6 + $0x8] sm:$0xf]
    %v338 = vld [vmem:[#allocation6 + $0xc] sm:$0xf]
    %v339 = vld [vmem:[#allocation6 + $0x10] sm:$0xf]
    %v340 = vld [vmem:[#allocation6 + $0x14] sm:$0xf]
    %v341 = vld [vmem:[#allocation6 + $0x18] sm:$0xf]
    %v342 = vld [vmem:[#allocation6 + $0x1c] sm:$0xf]
    %v343 = vld [vmem:[#allocation6 + $0x20] sm:$0xf]
    %v344 = vld [vmem:[#allocation6 + $0x24] sm:$0xf]
    %v345 = vld [vmem:[#allocation6 + $0x28] sm:$0xf]
    %v346 = vld [vmem:[#allocation6 + $0x2c] sm:$0xf]
    %v347 = vld [vmem:[#allocation6 + $0x30] sm:$0xf]
    %v348 = vld [vmem:[#allocation6 + $0x34] sm:$0xf]
    %v349 = vld [vmem:[#allocation6 + $0x38] sm:$0xf]
    %v350 = vld [vmem:[#allocation6 + $0x3c] sm:$0xf]
    %v351 = vld [vmem:[%s6] sm:$0x1]
    %v353 = vlaneseq
    %v354 = vshrl.u32 %v353, 7
    %v355 = vsub.s32 0, %v354
    %v356 = vrot.slane %v351, %v355
    %v374 = vunpack.c.l.b16 %v335
    %v375 = vunpack.c.l.b16 %v336
    %v376 = vunpack.c.l.b16 %v337
    %v377 = vunpack.c.l.b16 %v338
    %v378 = vunpack.c.l.b16 %v339
    %v379 = vunpack.c.l.b16 %v340
    %v380 = vunpack.c.l.b16 %v341
    %v381 = vunpack.c.l.b16 %v342
    %v382 = vunpack.c.l.b16 %v343
    %v383 = vunpack.c.l.b16 %v344
    %v384 = vunpack.c.l.b16 %v345
    %v385 = vunpack.c.l.b16 %v346
    %v386 = vunpack.c.l.b16 %v347
    %v387 = vunpack.c.l.b16 %v348
    %v388 = vunpack.c.l.b16 %v349
    %v389 = vunpack.c.l.b16 %v350
    %v390 = vpack.c.b16 %v375, %v374
    %v391 = vpack.c.b16 %v377, %v376
    %v392 = vpack.c.b16 %v379, %v378
    %v393 = vpack.c.b16 %v381, %v380
    %v394 = vpack.c.b16 %v383, %v382
    %v395 = vpack.c.b16 %v385, %v384
    %v396 = vpack.c.b16 %v387, %v386
    %v397 = vpack.c.b16 %v389, %v388
    %406 = vmatprep.subr.bf16.mxu0 0
    %407 = vmatpush1.bf16.msra.mxu0 %v397
    %408 = vmatprep.subr.bf16.mxu0 0
    %409 = vmatpush1.bf16.msra.mxu0 %v396
    %410 = vmatprep.subr.bf16.mxu0 0
    %411 = vmatpush1.bf16.msra.mxu0 %v395
    %412 = vmatprep.subr.bf16.mxu0 0
    %413 = vmatpush1.bf16.msra.mxu0 %v394
    %414 = vmatprep.subr.bf16.mxu0 0
    %415 = vmatpush1.bf16.msra.mxu0 %v393
    %416 = vmatprep.subr.bf16.mxu0 0
    %417 = vmatpush1.bf16.msra.mxu0 %v392
    %418 = vmatprep.subr.bf16.mxu0 0
    %419 = vmatpush1.bf16.msra.mxu0 %v391
    %420 = vmatprep.subr.bf16.mxu0 0
    %421 = vmatpush1.bf16.msra.mxu0 %v390
    %422 = vmatprep.subr.bf16.mxu0 0
    %423 = vmatpush2.bf16.msra.mxu0 0
    %424 = vmatprep.subr.bf16.mxu0 0
    %425 = vmatpush2.bf16.msra.mxu0 0
    %426 = vmatprep.subr.bf16.mxu0 0
    %427 = vmatpush2.bf16.msra.mxu0 0
    %428 = vmatprep.subr.bf16.mxu0 0
    %429 = vmatpush2.bf16.msra.mxu0 0
    %430 = vmatprep.subr.bf16.mxu0 0
    %431 = vmatpush2.bf16.msra.mxu0 0
    %432 = vmatprep.subr.bf16.mxu0 0
    %433 = vmatpush2.bf16.msra.mxu0 0
    %434 = vmatprep.subr.bf16.mxu0 0
    %435 = vmatpush2.bf16.msra.mxu0 0
    %436 = vmatprep.subr.bf16.mxu0 0
    %437 = vmatpush2.bf16.msra.mxu0 0
    %438 = vmatprep.mubr.bf16.mxu0 0
    %439 = vmatmul.mubr.bf16.gmra.mxu0 %v334
    %v440 = vpop.f32.mrf.mxu0
    %v441 = vadd.f32 %v356, %v440
    %v442 = vpop.f32.mrf.mxu0
    %v443 = vpop.f32.mrf.mxu0
    %v444 = vpop.f32.mrf.mxu0
    %445 = vdwg.mxu0
    %v446 = vadd.f32 %v441, %v220
    %v447 = vmax.f32 %v446, 0.0
    %v448 = vpack.c.bf16 %v447, %v447
    %v449 = vld [vmem:[#allocation7] sm:$0xf]
    %v450 = vld [vmem:[#allocation7 + $0x4] sm:$0xf]
    %v451 = vld [vmem:[#allocation7 + $0x8] sm:$0xf]
    %v452 = vld [vmem:[#allocation7 + $0xc] sm:$0xf]
    %v453 = vld [vmem:[#allocation7 + $0x10] sm:$0xf]
    %v454 = vld [vmem:[#allocation7 + $0x14] sm:$0xf]
    %v455 = vld [vmem:[#allocation7 + $0x18] sm:$0xf]
    %v456 = vld [vmem:[#allocation7 + $0x1c] sm:$0xf]
    %v457 = vld [vmem:[#allocation7 + $0x20] sm:$0xf]
    %v458 = vld [vmem:[#allocation7 + $0x24] sm:$0xf]
    %v459 = vld [vmem:[#allocation7 + $0x28] sm:$0xf]
    %v460 = vld [vmem:[#allocation7 + $0x2c] sm:$0xf]
    %v461 = vld [vmem:[#allocation7 + $0x30] sm:$0xf]
    %v462 = vld [vmem:[#allocation7 + $0x34] sm:$0xf]
    %v463 = vld [vmem:[#allocation7 + $0x38] sm:$0xf]
    %v464 = vld [vmem:[#allocation7 + $0x3c] sm:$0xf]
    %v465 = vld [vmem:[%s8] sm:$0x1]
    %v467 = vlaneseq
    %v468 = vshrl.u32 %v467, 7
    %v469 = vsub.s32 0, %v468
    %v470 = vrot.slane %v465, %v469
    %v488 = vunpack.c.l.b16 %v449
    %v489 = vunpack.c.l.b16 %v450
    %v490 = vunpack.c.l.b16 %v451
    %v491 = vunpack.c.l.b16 %v452
    %v492 = vunpack.c.l.b16 %v453
    %v493 = vunpack.c.l.b16 %v454
    %v494 = vunpack.c.l.b16 %v455
    %v495 = vunpack.c.l.b16 %v456
    %v496 = vunpack.c.l.b16 %v457
    %v497 = vunpack.c.l.b16 %v458
    %v498 = vunpack.c.l.b16 %v459
    %v499 = vunpack.c.l.b16 %v460
    %v500 = vunpack.c.l.b16 %v461
    %v501 = vunpack.c.l.b16 %v462
    %v502 = vunpack.c.l.b16 %v463
    %v503 = vunpack.c.l.b16 %v464
    %v504 = vpack.c.b16 %v489, %v488
    %v505 = vpack.c.b16 %v491, %v490
    %v506 = vpack.c.b16 %v493, %v492
    %v507 = vpack.c.b16 %v495, %v494
    %v508 = vpack.c.b16 %v497, %v496
    %v509 = vpack.c.b16 %v499, %v498
    %v510 = vpack.c.b16 %v501, %v500
    %v511 = vpack.c.b16 %v503, %v502
    %520 = vmatprep.subr.bf16.mxu0 0
    %521 = vmatpush1.bf16.msra.mxu0 %v511
    %522 = vmatprep.subr.bf16.mxu0 0
    %523 = vmatpush1.bf16.msra.mxu0 %v510
    %524 = vmatprep.subr.bf16.mxu0 0
    %525 = vmatpush1.bf16.msra.mxu0 %v509
    %526 = vmatprep.subr.bf16.mxu0 0
    %527 = vmatpush1.bf16.msra.mxu0 %v508
    %528 = vmatprep.subr.bf16.mxu0 0
    %529 = vmatpush1.bf16.msra.mxu0 %v507
    %530 = vmatprep.subr.bf16.mxu0 0
    %531 = vmatpush1.bf16.msra.mxu0 %v506
    %532 = vmatprep.subr.bf16.mxu0 0
    %533 = vmatpush1.bf16.msra.mxu0 %v505
    %534 = vmatprep.subr.bf16.mxu0 0
    %535 = vmatpush1.bf16.msra.mxu0 %v504
    %536 = vmatprep.subr.bf16.mxu0 0
    %537 = vmatpush2.bf16.msra.mxu0 0
    %538 = vmatprep.subr.bf16.mxu0 0
    %539 = vmatpush2.bf16.msra.mxu0 0
    %540 = vmatprep.subr.bf16.mxu0 0
    %541 = vmatpush2.bf16.msra.mxu0 0
    %542 = vmatprep.subr.bf16.mxu0 0
    %543 = vmatpush2.bf16.msra.mxu0 0
    %544 = vmatprep.subr.bf16.mxu0 0
    %545 = vmatpush2.bf16.msra.mxu0 0
    %546 = vmatprep.subr.bf16.mxu0 0
    %547 = vmatpush2.bf16.msra.mxu0 0
    %548 = vmatprep.subr.bf16.mxu0 0
    %549 = vmatpush2.bf16.msra.mxu0 0
    %550 = vmatprep.subr.bf16.mxu0 0
    %551 = vmatpush2.bf16.msra.mxu0 0
    %552 = vmatprep.mubr.bf16.mxu0 0
    %553 = vmatmul.mubr.bf16.gmra.mxu0 %v448
    %v554 = vpop.f32.mrf.mxu0
    %v555 = vadd.f32 %v470, %v554
    %v556 = vpop.f32.mrf.mxu0
    %v557 = vpop.f32.mrf.mxu0
    %v558 = vpop.f32.mrf.mxu0
    %559 = vdwg.mxu0
    %v560 = vmax.f32 %v555, 0.0
    %v561 = vpack.c.bf16 %v560, %v560
    %v562 = vld [vmem:[#allocation9] sm:$0xf]
    %v563 = vld [vmem:[#allocation9 + $0x4] sm:$0xf]
    %v564 = vld [vmem:[#allocation9 + $0x8] sm:$0xf]
    %v565 = vld [vmem:[#allocation9 + $0xc] sm:$0xf]
    %v566 = vld [vmem:[#allocation9 + $0x10] sm:$0xf]
    %v567 = vld [vmem:[#allocation9 + $0x14] sm:$0xf]
    %v568 = vld [vmem:[#allocation9 + $0x18] sm:$0xf]
    %v569 = vld [vmem:[#allocation9 + $0x1c] sm:$0xf]
    %v570 = vld [vmem:[#allocation9 + $0x20] sm:$0xf]
    %v571 = vld [vmem:[#allocation9 + $0x24] sm:$0xf]
    %v572 = vld [vmem:[#allocation9 + $0x28] sm:$0xf]
    %v573 = vld [vmem:[#allocation9 + $0x2c] sm:$0xf]
    %v574 = vld [vmem:[#allocation9 + $0x30] sm:$0xf]
    %v575 = vld [vmem:[#allocation9 + $0x34] sm:$0xf]
    %v576 = vld [vmem:[#allocation9 + $0x38] sm:$0xf]
    %v577 = vld [vmem:[#allocation9 + $0x3c] sm:$0xf]
    %v578 = vld [vmem:[%s10] sm:$0x1]
    %v580 = vlaneseq
    %v581 = vshrl.u32 %v580, 7
    %v582 = vsub.s32 0, %v581
    %v583 = vrot.slane %v578, %v582
    %v601 = vunpack.c.l.b16 %v562
    %v602 = vunpack.c.l.b16 %v563
    %v603 = vunpack.c.l.b16 %v564
    %v604 = vunpack.c.l.b16 %v565
    %v605 = vunpack.c.l.b16 %v566
    %v606 = vunpack.c.l.b16 %v567
    %v607 = vunpack.c.l.b16 %v568
    %v608 = vunpack.c.l.b16 %v569
    %v609 = vunpack.c.l.b16 %v570
    %v610 = vunpack.c.l.b16 %v571
    %v611 = vunpack.c.l.b16 %v572
    %v612 = vunpack.c.l.b16 %v573
    %v613 = vunpack.c.l.b16 %v574
    %v614 = vunpack.c.l.b16 %v575
    %v615 = vunpack.c.l.b16 %v576
    %v616 = vunpack.c.l.b16 %v577
    %v617 = vpack.c.b16 %v602, %v601
    %v618 = vpack.c.b16 %v604, %v603
    %v619 = vpack.c.b16 %v606, %v605
    %v620 = vpack.c.b16 %v608, %v607
    %v621 = vpack.c.b16 %v610, %v609
    %v622 = vpack.c.b16 %v612, %v611
    %v623 = vpack.c.b16 %v614, %v613
    %v624 = vpack.c.b16 %v616, %v615
    %633 = vmatprep.subr.bf16.mxu0 0
    %634 = vmatpush1.bf16.msra.mxu0 %v624
    %635 = vmatprep.subr.bf16.mxu0 0
    %636 = vmatpush1.bf16.msra.mxu0 %v623
    %637 = vmatprep.subr.bf16.mxu0 0
    %638 = vmatpush1.bf16.msra.mxu0 %v622
    %639 = vmatprep.subr.bf16.mxu0 0
    %640 = vmatpush1.bf16.msra.mxu0 %v621
    %641 = vmatprep.subr.bf16.mxu0 0
    %642 = vmatpush1.bf16.msra.mxu0 %v620
    %643 = vmatprep.subr.bf16.mxu0 0
    %644 = vmatpush1.bf16.msra.mxu0 %v619
    %645 = vmatprep.subr.bf16.mxu0 0
    %646 = vmatpush1.bf16.msra.mxu0 %v618
    %647 = vmatprep.subr.bf16.mxu0 0
    %648 = vmatpush1.bf16.msra.mxu0 %v617
    %649 = vmatprep.subr.bf16.mxu0 0
    %650 = vmatpush2.bf16.msra.mxu0 0
    %651 = vmatprep.subr.bf16.mxu0 0
    %652 = vmatpush2.bf16.msra.mxu0 0
    %653 = vmatprep.subr.bf16.mxu0 0
    %654 = vmatpush2.bf16.msra.mxu0 0
    %655 = vmatprep.subr.bf16.mxu0 0
    %656 = vmatpush2.bf16.msra.mxu0 0
    %657 = vmatprep.subr.bf16.mxu0 0
    %658 = vmatpush2.bf16.msra.mxu0 0
    %659 = vmatprep.subr.bf16.mxu0 0
    %660 = vmatpush2.bf16.msra.mxu0 0
    %661 = vmatprep.subr.bf16.mxu0 0
    %662 = vmatpush2.bf16.msra.mxu0 0
    %663 = vmatprep.subr.bf16.mxu0 0
    %664 = vmatpush2.bf16.msra.mxu0 0
    %665 = vmatprep.mubr.bf16.mxu0 0
    %666 = vmatmul.mubr.bf16.gmra.mxu0 %v561
    %v667 = vpop.f32.mrf.mxu0
    %v668 = vadd.f32 %v583, %v667
    %v669 = vpop.f32.mrf.mxu0
    %v670 = vpop.f32.mrf.mxu0
    %v671 = vpop.f32.mrf.mxu0
    %672 = vdwg.mxu0
    %673 = vst [vmem:[%s11] sm:$0xff] %v668
    // Predicated region
    $region66: #{resnet1d_pallas.1} parent=1 // pred_check
      _
    $region67: #{resnet1d_pallas.1} parent=1 // pred_check_branch
      %675 = sbr.rel (0) target = $region69
    $region68: #{resnet1d_pallas.1} parent=1 // pred_region
      _
    $region69: #{resnet1d_pallas.1} parent=1 // pred_fallthru
      _
    // Predicated region
    $region70: #{resnet1d_pallas.1} parent=1 // pred_check
      _
    $region71: #{resnet1d_pallas.1} parent=1 // pred_check_branch
      %677 = sbr.rel (0) target = $region73
    $region72: #{resnet1d_pallas.1} parent=1 // pred_region
      _
    $region73: #{resnet1d_pallas.1} parent=1 // pred_fallthru
      _
    %678 = vsyncpa [#allocation3], 1
    %679 = vsyncpa [#allocation5], 1
    %680 = vsyncpa [#allocation8], 1

</llo_original>
